<compile_context>
chip_gen: v5e
topology: v5e:2x2
jax: 0.10.0
libtpu: 0.0.40
codegen_flags: <defaults>
</compile_context>

<pallas_src>
import jax
import jax.numpy as jnp
from jax.experimental import pallas as pl
from jax.experimental.pallas import tpu as pltpu

LANE = 128
SUBLANE = 8
BT_ALIGN = 16            # bf16 sublane packing -> keep batch tiles 16-row aligned
MIN_PARALLEL_TILE = 128  # floor so splitting into >=2 steps never makes tiny tiles


def _round_up(n, m):
    return ((n + m - 1) // m) * m


def mlp_kernel(x_ref, w1_ref, b1_ref, w2_ref, b2_ref, w3_ref, b3_ref, o_ref):
    # Fused fc1->relu->fc2->relu->fc3 on one batch slab.
    # Dot operands are bf16 (halved HBM stream, single-pass MXU everywhere);
    # accumulation, bias add and ReLU stay f32.
    x = x_ref[...]                                                    # (bt, d_in) bf16
    h1 = jnp.dot(x, w1_ref[...], preferred_element_type=jnp.float32) + b1_ref[...]
    h1 = jnp.maximum(h1, 0.0).astype(jnp.bfloat16)                    # relu, f32 -> bf16 operand
    h2 = jnp.dot(h1, w2_ref[...], preferred_element_type=jnp.float32) + b2_ref[...]
    h2 = jnp.maximum(h2, 0.0).astype(jnp.bfloat16)                    # relu, f32 -> bf16 operand
    out = jnp.dot(h2, w3_ref[...], preferred_element_type=jnp.float32) + b3_ref[...]
    o_ref[...] = out.astype(o_ref.dtype)                              # (bt, 8) f32, lane-narrow


def prepare_params(params):
    """One-time layout prep (hoisted out of the per-call path).

    - Transpose PyTorch-style (out_features, in_features) weights to (in, out).
    - Zero-pad hidden (64) and mid (10) dims to 128 lanes (one MXU tile anyway),
      but the OUTPUT dim only to 8 so the writeback DMA carries no 128-lane
      zero padding.
    - Cast weights to bf16 once; biases stay f32 (bias add / ReLU stay f32).
    Pad entries are exactly zero, so padded columns/rows contribute nothing.
    """
    w1, b1, w2, b2, w3, b3 = params
    h, d_in = w1.shape
    d_mid = w2.shape[0]
    d_out = w3.shape[0]

    H = _round_up(h, LANE)
    MID = _round_up(d_mid, LANE)
    OUT = _round_up(d_out, SUBLANE)   # 8-wide output: no zero-lane writeback

    w1t = jnp.zeros((d_in, H), jnp.bfloat16).at[:, :h].set(w1.T.astype(jnp.bfloat16))
    b1r = jnp.zeros((1, H), jnp.float32).at[:, :h].set(b1)
    w2t = jnp.zeros((H, MID), jnp.bfloat16).at[:h, :d_mid].set(w2.T.astype(jnp.bfloat16))
    b2r = jnp.zeros((1, MID), jnp.float32).at[:, :d_mid].set(b2)
    w3t = jnp.zeros((MID, OUT), jnp.bfloat16).at[:d_mid, :d_out].set(w3.T.astype(jnp.bfloat16))
    b3r = jnp.zeros((1, OUT), jnp.float32).at[:, :d_out].set(b3)
    return (w1t, b1r, w2t, b2r, w3t, b3r), d_out


def softmax_model_forward(x, prepared, d_out, *, batch_tile=2048):
    """SoftmaxModel forward pass (fc1->relu->fc2->relu->fc3) via one fused kernel."""
    w1t, b1r, w2t, b2r, w3t, b3r = prepared
    B, d_in = x.shape
    H = w1t.shape[1]
    MID = w2t.shape[1]
    OUT = w3t.shape[1]

    # Tile choice: big slabs amortize per-grid-step overhead, but keep >=2
    # (target ~4) grid steps for non-trivial B so v7x's 2 TensorCores both get
    # "parallel" steps.  Never exceed the (aligned) batch itself.
    bt = min(batch_tile, max(MIN_PARALLEL_TILE, _round_up((B + 3) // 4, BT_ALIGN)))
    bt = min(bt, _round_up(B, BT_ALIGN))
    B_pad = _round_up(B, bt)
    x_p = x if B_pad == B else jnp.pad(x, ((0, B_pad - B), (0, 0)))
    x_p = x_p.astype(jnp.bfloat16)          # halve streamed x bytes; accum stays f32
    grid = (B_pad // bt,)

    const = dict(pipeline_mode=pl.Buffered(1))   # grid-invariant operands: single buffer

    out = pl.pallas_call(
        mlp_kernel,
        out_shape=jax.ShapeDtypeStruct((B_pad, OUT), jnp.float32),
        grid_spec=pltpu.PrefetchScalarGridSpec(
            num_scalar_prefetch=0,
            grid=grid,
            in_specs=[
                pl.BlockSpec((bt, d_in), lambda i: (i, 0)),            # x slab (streams)
                pl.BlockSpec((d_in, H), lambda i: (0, 0), **const),    # w1.T (bf16, padded)
                pl.BlockSpec((1, H), lambda i: (0, 0), **const),       # b1 (f32)
                pl.BlockSpec((H, MID), lambda i: (0, 0), **const),     # w2.T (bf16, padded)
                pl.BlockSpec((1, MID), lambda i: (0, 0), **const),     # b2 (f32)
                pl.BlockSpec((MID, OUT), lambda i: (0, 0), **const),   # w3.T (bf16, 8-wide)
                pl.BlockSpec((1, OUT), lambda i: (0, 0), **const),     # b3 (f32)
            ],
            out_specs=pl.BlockSpec((bt, OUT), lambda i: (i, 0)),       # 8-wide f32 out
        ),
        compiler_params=pltpu.CompilerParams(
            dimension_semantics=("parallel",)),                        # megacore-shardable
    )(x_p, w1t, b1r, w2t, b2r, w3t, b3r)

    # Cheap wrapper-side layout plumbing: drop batch + lane padding.
    return out[:B, :d_out]


def init_params(key, input_dim, hidden_dim, output_dim):
    """Deterministic synthetic parameters with PyTorch nn.Linear shapes."""
    ks = jax.random.split(key, 6)

    def lin(kw, kb, out_f, in_f):
        bound = 1.0 / jnp.sqrt(in_f)
        w = jax.random.uniform(kw, (out_f, in_f), jnp.float32, -bound, bound)
        b = jax.random.uniform(kb, (out_f,), jnp.float32, -bound, bound)
        return w, b

    w1, b1 = lin(ks[0], ks[1], hidden_dim, input_dim)
    w2, b2 = lin(ks[2], ks[3], 10, hidden_dim)
    w3, b3 = lin(ks[4], ks[5], output_dim, 10)
    # NOTE: bn1 (BatchNorm1d) params are not created because forward() never uses bn1.
    return (w1, b1, w2, b2, w3, b3)


def _reference(x, params):
    # Pure-f32 reference of the PyTorch forward (no softmax in forward()).
    w1, b1, w2, b2, w3, b3 = params
    r = jnp.maximum(x @ w1.T + b1, 0.0)
    r = jnp.maximum(r @ w2.T + b2, 0.0)
    return r @ w3.T + b3


if __name__ == "__main__":
    input_dim = 32
    hidden_dim = 64
    output_dim = 5
    batch = 8

    key = jax.random.PRNGKey(0)
    k_x, k_p, k_x2 = jax.random.split(key, 3)
    params = init_params(k_p, input_dim, hidden_dim, output_dim)
    prepared, d_out = prepare_params(params)   # one-time layout prep (transpose/pad/bf16)

    # Tolerance is vs. the f32 reference; bf16 dot operands (f32 accumulation)
    # keep the error well inside 3e-2 at these magnitudes.
    TOL = 3e-2

    # Small primary case (fits in one slab).
    x = jax.random.normal(k_x, (batch, input_dim), jnp.float32)
    out = jax.block_until_ready(softmax_model_forward(x, prepared, d_out))
    assert out.shape == (batch, output_dim)
    ref = _reference(x, params)
    assert jnp.allclose(out, ref, atol=TOL, rtol=TOL), float(jnp.max(jnp.abs(out - ref)))

    # Ragged / multi-tile case (bt=128 -> 3 "parallel" grid steps, exercises
    # batch padding and v7x megacore sharding).
    x2 = jax.random.normal(k_x2, (300, input_dim), jnp.float32)
    out2 = jax.block_until_ready(softmax_model_forward(x2, prepared, d_out))
    assert out2.shape == (300, output_dim)
    ref2 = _reference(x2, params)
    assert jnp.allclose(out2, ref2, atol=TOL, rtol=TOL), float(jnp.max(jnp.abs(out2 - ref2)))

    print("KERNEL_OK")
</pallas_src>

<mosaic_0001>
module attributes {stable_mosaic.version = 11 : i64} {
  func.func @mlp_kernel(%arg0: i32, %arg1: memref<16x32xbf16, #tpu.memory_space<vmem>>, %arg2: memref<32x128xbf16, #tpu.memory_space<vmem>>, %arg3: memref<1x128xf32, #tpu.memory_space<vmem>>, %arg4: memref<128x128xbf16, #tpu.memory_space<vmem>>, %arg5: memref<1x128xf32, #tpu.memory_space<vmem>>, %arg6: memref<128x8xbf16, #tpu.memory_space<vmem>>, %arg7: memref<1x8xf32, #tpu.memory_space<vmem>>, %arg8: memref<16x8xf32, #tpu.memory_space<vmem>>) attributes {dimension_semantics = [#tpu.dimension_semantics<parallel>], iteration_bounds = array<i64: 1>, scalar_prefetch = 0 : i64, scratch_operands = 0 : i64, tpu.core_type = #tpu.core_type<tc>, window_params = [{transform_indices = @transform_0, window_bounds = array<i64: 16, 32>}, {pipeline_mode = #tpu.pipeline_mode<synchronous>, transform_indices = @transform_1, window_bounds = array<i64: 32, 128>}, {pipeline_mode = #tpu.pipeline_mode<synchronous>, transform_indices = @transform_2, window_bounds = array<i64: 1, 128>}, {pipeline_mode = #tpu.pipeline_mode<synchronous>, transform_indices = @transform_3, window_bounds = array<i64: 128, 128>}, {pipeline_mode = #tpu.pipeline_mode<synchronous>, transform_indices = @transform_4, window_bounds = array<i64: 1, 128>}, {pipeline_mode = #tpu.pipeline_mode<synchronous>, transform_indices = @transform_5, window_bounds = array<i64: 128, 8>}, {pipeline_mode = #tpu.pipeline_mode<synchronous>, transform_indices = @transform_6, window_bounds = array<i64: 1, 8>}, {transform_indices = @transform_7, window_bounds = array<i64: 16, 8>}]} {
    %c0 = arith.constant 0 : index
    %c0_0 = arith.constant 0 : index
    %0 = vector.load %arg1[%c0, %c0_0] : memref<16x32xbf16, #tpu.memory_space<vmem>>, vector<16x32xbf16>
    %c0_1 = arith.constant 0 : index
    %c0_2 = arith.constant 0 : index
    %1 = vector.load %arg2[%c0_1, %c0_2] : memref<32x128xbf16, #tpu.memory_space<vmem>>, vector<32x128xbf16>
    %cst = arith.constant dense<0.000000e+00> : vector<16x128xf32>
    %2 = tpu.matmul %0, %1, %cst {dimension_numbers = #tpu.dot_dimension_numbers<[1], [0], [0], [1], [0, 0, 1, 1], [], []>} : vector<16x32xbf16>, vector<32x128xbf16>, vector<16x128xf32> -> vector<16x128xf32>
    %c0_3 = arith.constant 0 : index
    %c0_4 = arith.constant 0 : index
    %3 = vector.load %arg3[%c0_3, %c0_4] : memref<1x128xf32, #tpu.memory_space<vmem>>, vector<1x128xf32>
    %4 = vector.broadcast %3 : vector<1x128xf32> to vector<16x128xf32>
    %5 = arith.addf %2, %4 : vector<16x128xf32>
    %cst_5 = arith.constant 0.000000e+00 : f32
    %6 = vector.broadcast %cst_5 : f32 to vector<16x128xf32>
    %7 = arith.maximumf %5, %6 : vector<16x128xf32>
    %8 = arith.truncf %7 : vector<16x128xf32> to vector<16x128xbf16>
    %c0_6 = arith.constant 0 : index
    %c0_7 = arith.constant 0 : index
    %9 = vector.load %arg4[%c0_6, %c0_7] : memref<128x128xbf16, #tpu.memory_space<vmem>>, vector<128x128xbf16>
    %cst_8 = arith.constant dense<0.000000e+00> : vector<16x128xf32>
    %10 = tpu.matmul %8, %9, %cst_8 {dimension_numbers = #tpu.dot_dimension_numbers<[1], [0], [0], [1], [0, 0, 1, 1], [], []>} : vector<16x128xbf16>, vector<128x128xbf16>, vector<16x128xf32> -> vector<16x128xf32>
    %c0_9 = arith.constant 0 : index
    %c0_10 = arith.constant 0 : index
    %11 = vector.load %arg5[%c0_9, %c0_10] : memref<1x128xf32, #tpu.memory_space<vmem>>, vector<1x128xf32>
    %12 = vector.broadcast %11 : vector<1x128xf32> to vector<16x128xf32>
    %13 = arith.addf %10, %12 : vector<16x128xf32>
    %cst_11 = arith.constant 0.000000e+00 : f32
    %14 = vector.broadcast %cst_11 : f32 to vector<16x128xf32>
    %15 = arith.maximumf %13, %14 : vector<16x128xf32>
    %16 = arith.truncf %15 : vector<16x128xf32> to vector<16x128xbf16>
    %c0_12 = arith.constant 0 : index
    %c0_13 = arith.constant 0 : index
    %17 = vector.load %arg6[%c0_12, %c0_13] : memref<128x8xbf16, #tpu.memory_space<vmem>>, vector<128x8xbf16>
    %cst_14 = arith.constant dense<0.000000e+00> : vector<16x8xf32>
    %18 = tpu.matmul %16, %17, %cst_14 {dimension_numbers = #tpu.dot_dimension_numbers<[1], [0], [0], [1], [0, 0, 1, 1], [], []>} : vector<16x128xbf16>, vector<128x8xbf16>, vector<16x8xf32> -> vector<16x8xf32>
    %c0_15 = arith.constant 0 : index
    %c0_16 = arith.constant 0 : index
    %19 = vector.load %arg7[%c0_15, %c0_16] : memref<1x8xf32, #tpu.memory_space<vmem>>, vector<1x8xf32>
    %20 = vector.broadcast %19 : vector<1x8xf32> to vector<16x8xf32>
    %21 = arith.addf %18, %20 : vector<16x8xf32>
    %c0_17 = arith.constant 0 : index
    %c0_18 = arith.constant 0 : index
    %22 = vector.load %arg8[%c0_17, %c0_18] : memref<16x8xf32, #tpu.memory_space<vmem>>, vector<16x8xf32>
    tpu.vector_store %arg8[%c0_17, %c0_18], %21 {strides = array<i32>} : memref<16x8xf32, #tpu.memory_space<vmem>>, vector<16x8xf32>,
    return
  }
  func.func @transform_0(%arg0: i32) -> (i32, i32) {
    %c0_i32 = arith.constant 0 : i32
    %c0_i32_0 = arith.constant 0 : i32
    return %arg0, %c0_i32 : i32, i32
  }
  func.func @transform_1(%arg0: i32) -> (i32, i32) {
    %c0_i32 = arith.constant 0 : i32
    %c0_i32_0 = arith.constant 0 : i32
    %c0_i32_1 = arith.constant 0 : i32
    return %c0_i32, %c0_i32_0 : i32, i32
  }
  func.func @transform_2(%arg0: i32) -> (i32, i32) {
    %c0_i32 = arith.constant 0 : i32
    %c0_i32_0 = arith.constant 0 : i32
    %c0_i32_1 = arith.constant 0 : i32
    return %c0_i32, %c0_i32_0 : i32, i32
  }
  func.func @transform_3(%arg0: i32) -> (i32, i32) {
    %c0_i32 = arith.constant 0 : i32
    %c0_i32_0 = arith.constant 0 : i32
    %c0_i32_1 = arith.constant 0 : i32
    return %c0_i32, %c0_i32_0 : i32, i32
  }
  func.func @transform_4(%arg0: i32) -> (i32, i32) {
    %c0_i32 = arith.constant 0 : i32
    %c0_i32_0 = arith.constant 0 : i32
    %c0_i32_1 = arith.constant 0 : i32
    return %c0_i32, %c0_i32_0 : i32, i32
  }
  func.func @transform_5(%arg0: i32) -> (i32, i32) {
    %c0_i32 = arith.constant 0 : i32
    %c0_i32_0 = arith.constant 0 : i32
    %c0_i32_1 = arith.constant 0 : i32
    return %c0_i32, %c0_i32_0 : i32, i32
  }
  func.func @transform_6(%arg0: i32) -> (i32, i32) {
    %c0_i32 = arith.constant 0 : i32
    %c0_i32_0 = arith.constant 0 : i32
    %c0_i32_1 = arith.constant 0 : i32
    return %c0_i32, %c0_i32_0 : i32, i32
  }
  func.func @transform_7(%arg0: i32) -> (i32, i32) {
    %c0_i32 = arith.constant 0 : i32
    %c0_i32_0 = arith.constant 0 : i32
    return %arg0, %c0_i32 : i32, i32
  }
}

</mosaic_0001>

<llo_original>
// kernel: tpu_custom_call.1
$region0: #{tpu_custom_call.1}
  #allocation0 [shape = 'u32[]', space=smem, size = 0x4, offset = 0x4, fixed_abs, tag = 'smem constant byte address 0x4 - core index']
  #allocation1 [shape = 'u32[72,128]{1,0:T(1,128)}', space=vmem, size = 0x9000, scoped, tag = 'internal scratch']
  %s0 = inlined_call_operand.hbm [shape: bf16[16,32], index: 0, kind: input, shape index: {}]
  %s1 = inlined_call_operand.hbm [shape: bf16[32,128], index: 1, kind: input, shape index: {}]
  %s2 = inlined_call_operand.vmem [shape: f32[1,128], index: 2, kind: input, shape index: {}]
  %s3 = inlined_call_operand.vmem [shape: bf16[128,128], index: 3, kind: input, shape index: {}]
  %s4 = inlined_call_operand.vmem [shape: f32[1,128], index: 4, kind: input, shape index: {}]
  %s5 = inlined_call_operand.vmem [shape: bf16[128,8], index: 5, kind: input, shape index: {}]
  %s6 = inlined_call_operand.vmem [shape: f32[1,8], index: 6, kind: input, shape index: {}]
  %s7 = inlined_call_operand.vmem [shape: f32[16,8], index: 7, kind: output, shape index: {}]
  %s8 = sld [smem:[#allocation0]]
  $region46: #{tpu_custom_call.1} parent=0
    _
  %s10 = ssub.s32 1, %s8
  %s11 = scalar_select 0, %s10, %s8
  $region1: #{tpu_custom_call.1} parent=0
    #allocation2 [shape = 'u8[4096]{0}', space=vmem, size = 0x1000, scoped, tag = 'input window, operand 0, single buffered']
    #allocation3 [shape = 's32[1]{0}', space=sflag, size = 0x4, scoped, tag = 'scoped memory for tpu_custom_call.1']
    #allocation4 [shape = 'u8[8192]{0}', space=vmem, size = 0x2000, scoped, tag = 'input window, operand 1, single buffered']
    #allocation5 [shape = 's32[1]{0}', space=sflag, size = 0x4, scoped, tag = 'scoped memory for tpu_custom_call.1']
    %12 = vsyncpa [#allocation3], 0
    %13 = vsyncpa [#allocation5], 0
    // Predicated region
    $region2: #{tpu_custom_call.1} parent=1 // pred_check
      _
    $region3: #{tpu_custom_call.1} parent=1 // pred_check_branch
      %15 = sbr.rel (0) target = $region5
    $region4: #{tpu_custom_call.1} parent=1 // pred_region
      %17 = vsyncadd [#allocation3], 0
      %s18 = sshll.u32 %s0, 4
      %s19 = int_to_ptr.hbm [resolvable:$true] %s18
      %s20 = sshll.u32 [#allocation2], 4
      %s21 = int_to_ptr.vmem [resolvable:$true] %s20
      %26 = dma.hbm_to_vmem [thread:$0]  %s19, 128, %s21, [#allocation3], 64, 64, 4
    $region5: #{tpu_custom_call.1} parent=1 // pred_fallthru
      _
    // Predicated region
    $region6: #{tpu_custom_call.1} parent=1 // pred_check
      _
    $region7: #{tpu_custom_call.1} parent=1 // pred_check_branch
      %28 = sbr.rel (0) target = $region9
    $region8: #{tpu_custom_call.1} parent=1 // pred_region
      %30 = vsyncadd [#allocation5], 0
      %s31 = sshll.u32 %s1, 4
      %s32 = int_to_ptr.hbm [resolvable:$true] %s31
      %s33 = sshll.u32 [#allocation4], 4
      %s34 = int_to_ptr.vmem [resolvable:$true] %s33
      %39 = dma.hbm_to_vmem [thread:$0]  %s32, 256, %s34, [#allocation5], 64, 64, 4
    $region9: #{tpu_custom_call.1} parent=1 // pred_fallthru
      _
    // Predicated region
    $region10: #{tpu_custom_call.1} parent=1 // pred_check
      _
    $region11: #{tpu_custom_call.1} parent=1 // pred_check_branch
      %41 = sbr.rel (0) target = $region13
    $region12: #{tpu_custom_call.1} parent=1 // pred_region
      _
    $region13: #{tpu_custom_call.1} parent=1 // pred_fallthru
      _
    // Predicated region
    $region14: #{tpu_custom_call.1} parent=1 // pred_check
      _
    $region15: #{tpu_custom_call.1} parent=1 // pred_check_branch
      %43 = sbr.rel (0) target = $region17
    $region16: #{tpu_custom_call.1} parent=1 // pred_region
      _
    $region17: #{tpu_custom_call.1} parent=1 // pred_fallthru
      _
    // Predicated region
    $region18: #{tpu_custom_call.1} parent=1 // pred_check
      _
    $region19: #{tpu_custom_call.1} parent=1 // pred_check_branch
      %45 = sbr.rel (0) target = $region21
    $region20: #{tpu_custom_call.1} parent=1 // pred_region
      _
    $region21: #{tpu_custom_call.1} parent=1 // pred_fallthru
      _
    // Predicated region
    $region22: #{tpu_custom_call.1} parent=1 // pred_check
      _
    $region23: #{tpu_custom_call.1} parent=1 // pred_check_branch
      %47 = sbr.rel (0) target = $region25
    $region24: #{tpu_custom_call.1} parent=1 // pred_region
      _
    $region25: #{tpu_custom_call.1} parent=1 // pred_fallthru
      _
    // Predicated region
    $region26: #{tpu_custom_call.1} parent=1 // pred_check
      _
    $region27: #{tpu_custom_call.1} parent=1 // pred_check_branch
      %49 = sbr.rel (0) target = $region29
    $region28: #{tpu_custom_call.1} parent=1 // pred_region
      _
    $region29: #{tpu_custom_call.1} parent=1 // pred_fallthru
      _
    // Predicated region
    $region30: #{tpu_custom_call.1} parent=1 // pred_check
      _
    $region31: #{tpu_custom_call.1} parent=1 // pred_check_branch
      %51 = sbr.rel (0) target = $region33
    $region32: #{tpu_custom_call.1} parent=1 // pred_region
      %53 = dma.done [#allocation3], 128
    $region33: #{tpu_custom_call.1} parent=1 // pred_fallthru
      _
    // Predicated region
    $region34: #{tpu_custom_call.1} parent=1 // pred_check
      _
    $region35: #{tpu_custom_call.1} parent=1 // pred_check_branch
      %55 = sbr.rel (0) target = $region37
    $region36: #{tpu_custom_call.1} parent=1 // pred_region
      %57 = dma.done [#allocation5], 256
    $region37: #{tpu_custom_call.1} parent=1 // pred_fallthru
      _
    %v59 = vld [vmem:[#allocation2] sm:$0xf]
    %v60 = vld [vmem:[#allocation2 + $0x4] sm:$0xf]
    %v61 = vld [vmem:[#allocation4] sm:$0xf]
    %v62 = vld [vmem:[#allocation4 + $0x4] sm:$0xf]
    %v63 = vld [vmem:[#allocation4 + $0x8] sm:$0xf]
    %v64 = vld [vmem:[#allocation4 + $0xc] sm:$0xf]
    %v65 = vld [vmem:[%s2] sm:$0x1]
    %v67 = vperm.slane %v65, 0
    %v71 = vunpack.c.l.b16 %v59
    %v72 = vunpack.c.l.b16 %v60
    %v73 = vpack.c.b16 %v72, %v71
    %v78 = vunpack.c.l.b16 %v61
    %v79 = vunpack.c.l.b16 %v62
    %v80 = vunpack.c.l.b16 %v63
    %v81 = vunpack.c.l.b16 %v64
    %v82 = vpack.c.b16 %v79, %v78
    %v83 = vpack.c.b16 %v81, %v80
    %vm86 = vcmask 261120
    %v88 = vsel %vm86, %v73, 0
    %90 = vmatpush.bf16.msra.mxu0 0
    %91 = vmatpush.bf16.msra.mxu0 0
    %92 = vmatpush.bf16.msra.mxu0 0
    %93 = vmatpush.bf16.msra.mxu0 0
    %94 = vmatpush.bf16.msra.mxu0 0
    %95 = vmatpush.bf16.msra.mxu0 0
    %96 = vmatpush.bf16.msra.mxu0 %v83
    %97 = vmatpush.bf16.msra.mxu0 %v82
    %98 = vmatmul.bf16.gmra.mxu0 %v88
    %v99 = vpop.f32.mrf.mxu0
    %v100 = vadd.f32 %v67, %v99
    %v101 = vpop.f32.mrf.mxu0
    %v102 = vadd.f32 %v67, %v101
    %103 = vdwg.mxu0
    %v104 = vmax.f32 %v100, 0.0
    %v105 = vmax.f32 %v102, 0.0
    %v106 = vpack.c.bf16 %v105, %v104
    %v107 = vld [vmem:[%s3] sm:$0xf]
    %v108 = vld [vmem:[%s3 + $0x4] sm:$0xf]
    %v109 = vld [vmem:[%s3 + $0x8] sm:$0xf]
    %v110 = vld [vmem:[%s3 + $0xc] sm:$0xf]
    %v111 = vld [vmem:[%s3 + $0x10] sm:$0xf]
    %v112 = vld [vmem:[%s3 + $0x14] sm:$0xf]
    %v113 = vld [vmem:[%s3 + $0x18] sm:$0xf]
    %v114 = vld [vmem:[%s3 + $0x1c] sm:$0xf]
    %v115 = vld [vmem:[%s3 + $0x20] sm:$0xf]
    %v116 = vld [vmem:[%s3 + $0x24] sm:$0xf]
    %v117 = vld [vmem:[%s3 + $0x28] sm:$0xf]
    %v118 = vld [vmem:[%s3 + $0x2c] sm:$0xf]
    %v119 = vld [vmem:[%s3 + $0x30] sm:$0xf]
    %v120 = vld [vmem:[%s3 + $0x34] sm:$0xf]
    %v121 = vld [vmem:[%s3 + $0x38] sm:$0xf]
    %v122 = vld [vmem:[%s3 + $0x3c] sm:$0xf]
    %v123 = vld [vmem:[%s4] sm:$0x1]
    %v125 = vperm.slane %v123, 0
    %v143 = vunpack.c.l.b16 %v107
    %v144 = vunpack.c.l.b16 %v108
    %v145 = vunpack.c.l.b16 %v109
    %v146 = vunpack.c.l.b16 %v110
    %v147 = vunpack.c.l.b16 %v111
    %v148 = vunpack.c.l.b16 %v112
    %v149 = vunpack.c.l.b16 %v113
    %v150 = vunpack.c.l.b16 %v114
    %v151 = vunpack.c.l.b16 %v115
    %v152 = vunpack.c.l.b16 %v116
    %v153 = vunpack.c.l.b16 %v117
    %v154 = vunpack.c.l.b16 %v118
    %v155 = vunpack.c.l.b16 %v119
    %v156 = vunpack.c.l.b16 %v120
    %v157 = vunpack.c.l.b16 %v121
    %v158 = vunpack.c.l.b16 %v122
    %v159 = vpack.c.b16 %v144, %v143
    %v160 = vpack.c.b16 %v146, %v145
    %v161 = vpack.c.b16 %v148, %v147
    %v162 = vpack.c.b16 %v150, %v149
    %v163 = vpack.c.b16 %v152, %v151
    %v164 = vpack.c.b16 %v154, %v153
    %v165 = vpack.c.b16 %v156, %v155
    %v166 = vpack.c.b16 %v158, %v157
    %175 = vmatpush.bf16.msra.mxu0 %v166
    %176 = vmatpush.bf16.msra.mxu0 %v165
    %177 = vmatpush.bf16.msra.mxu0 %v164
    %178 = vmatpush.bf16.msra.mxu0 %v163
    %179 = vmatpush.bf16.msra.mxu0 %v162
    %180 = vmatpush.bf16.msra.mxu0 %v161
    %181 = vmatpush.bf16.msra.mxu0 %v160
    %182 = vmatpush.bf16.msra.mxu0 %v159
    %183 = vmatmul.bf16.gmra.mxu0 %v106
    %v184 = vpop.f32.mrf.mxu0
    %v185 = vadd.f32 %v125, %v184
    %v186 = vpop.f32.mrf.mxu0
    %v187 = vadd.f32 %v125, %v186
    %188 = vdwg.mxu0
    %v189 = vmax.f32 %v185, 0.0
    %v190 = vmax.f32 %v187, 0.0
    %v191 = vpack.c.bf16 %v190, %v189
    %v192 = vld [vmem:[%s5] sm:$0xf]
    %v193 = vld [vmem:[%s5 + $0x4] sm:$0xf]
    %v194 = vld [vmem:[%s5 + $0x8] sm:$0xf]
    %v195 = vld [vmem:[%s5 + $0xc] sm:$0xf]
    %v196 = vld [vmem:[%s5 + $0x10] sm:$0xf]
    %v197 = vld [vmem:[%s5 + $0x14] sm:$0xf]
    %v198 = vld [vmem:[%s5 + $0x18] sm:$0xf]
    %v199 = vld [vmem:[%s5 + $0x1c] sm:$0xf]
    %v200 = vld [vmem:[%s5 + $0x20] sm:$0xf]
    %v201 = vld [vmem:[%s5 + $0x24] sm:$0xf]
    %v202 = vld [vmem:[%s5 + $0x28] sm:$0xf]
    %v203 = vld [vmem:[%s5 + $0x2c] sm:$0xf]
    %v204 = vld [vmem:[%s5 + $0x30] sm:$0xf]
    %v205 = vld [vmem:[%s5 + $0x34] sm:$0xf]
    %v206 = vld [vmem:[%s5 + $0x38] sm:$0xf]
    %v207 = vld [vmem:[%s5 + $0x3c] sm:$0xf]
    %v208 = vld [vmem:[%s6] sm:$0x1]
    %v210 = vperm.slane %v208, 0
    %v228 = vunpack.c.l.b16 %v192
    %v229 = vunpack.c.l.b16 %v193
    %v230 = vunpack.c.l.b16 %v194
    %v231 = vunpack.c.l.b16 %v195
    %v232 = vunpack.c.l.b16 %v196
    %v233 = vunpack.c.l.b16 %v197
    %v234 = vunpack.c.l.b16 %v198
    %v235 = vunpack.c.l.b16 %v199
    %v236 = vunpack.c.l.b16 %v200
    %v237 = vunpack.c.l.b16 %v201
    %v238 = vunpack.c.l.b16 %v202
    %v239 = vunpack.c.l.b16 %v203
    %v240 = vunpack.c.l.b16 %v204
    %v241 = vunpack.c.l.b16 %v205
    %v242 = vunpack.c.l.b16 %v206
    %v243 = vunpack.c.l.b16 %v207
    %v244 = vpack.c.b16 %v229, %v228
    %v245 = vpack.c.b16 %v231, %v230
    %v246 = vpack.c.b16 %v233, %v232
    %v247 = vpack.c.b16 %v235, %v234
    %v248 = vpack.c.b16 %v237, %v236
    %v249 = vpack.c.b16 %v239, %v238
    %v250 = vpack.c.b16 %v241, %v240
    %v251 = vpack.c.b16 %v243, %v242
    %260 = vmatpush.bf16.msra.mxu0 %v251
    %261 = vmatpush.bf16.msra.mxu0 %v250
    %262 = vmatpush.bf16.msra.mxu0 %v249
    %263 = vmatpush.bf16.msra.mxu0 %v248
    %264 = vmatpush.bf16.msra.mxu0 %v247
    %265 = vmatpush.bf16.msra.mxu0 %v246
    %266 = vmatpush.bf16.msra.mxu0 %v245
    %267 = vmatpush.bf16.msra.mxu0 %v244
    %268 = vmatmul.bf16.gmra.mxu0 %v191
    %v269 = vpop.f32.mrf.mxu0
    %v270 = vadd.f32 %v210, %v269
    %v271 = vpop.f32.mrf.mxu0
    %v272 = vadd.f32 %v210, %v271
    %273 = vdwg.mxu0
    %vm274 = vcmask 64512
    %275 = vst.msk [vmem:[%s7] sm:$0xff] %vm274, %v270
    %276 = vst.msk [vmem:[%s7 + $0x8] sm:$0xff] %vm274, %v272
    // Predicated region
    $region38: #{tpu_custom_call.1} parent=1 // pred_check
      _
    $region39: #{tpu_custom_call.1} parent=1 // pred_check_branch
      %278 = sbr.rel (0) target = $region41
    $region40: #{tpu_custom_call.1} parent=1 // pred_region
      _
    $region41: #{tpu_custom_call.1} parent=1 // pred_fallthru
      _
    // Predicated region
    $region42: #{tpu_custom_call.1} parent=1 // pred_check
      _
    $region43: #{tpu_custom_call.1} parent=1 // pred_check_branch
      %280 = sbr.rel (0) target = $region45
    $region44: #{tpu_custom_call.1} parent=1 // pred_region
      _
    $region45: #{tpu_custom_call.1} parent=1 // pred_fallthru
      _
    %281 = vsyncpa [#allocation3], 1
    %282 = vsyncpa [#allocation5], 1

</llo_original>
